<compile_context>
chip_gen: v5e
topology: v5e:2x2
jax: 0.10.0
libtpu: 0.0.40
codegen_flags: <defaults>
</compile_context>

<pallas_src>
import jax
import jax.numpy as jnp
from jax.experimental import pallas as pl
from jax.experimental.pallas import tpu as pltpu


def _chomp_copy_kernel(x_ref, o_ref):
    # x_ref: (R_BLK, T_in_blk), o_ref: (R_BLK, T_out).
    # T_in_blk is either T_out (narrowed DMA -> straight copy) or full T
    # (slice in VMEM); the slice below is a no-op in the first case.
    o_ref[...] = x_ref[:, : o_ref.shape[-1]]


def _pick_row_block(rows: int, in_cols: int, out_cols: int, itemsize: int) -> int:
    """Row-block size: sublane-packed, VMEM-bounded, >=2 grid steps if possible."""
    sub = max(8, 32 // itemsize)           # 8 rows (f32), 16 (bf16), 32 (int8/fp8)
    if rows <= sub:
        return rows                         # block == full dim is always legal

    def _round_up(v: int, m: int) -> int:
        return -(-v // m) * m

    def _round_down(v: int, m: int) -> int:
        return max(m, (v // m) * m)

    # Target ~2 MiB per input tile: big enough for near-roofline HBM BW,
    # small enough to keep the pipeline responsive.
    target_in_bytes = 2 * 1024 * 1024
    r = _round_down(target_in_bytes // max(in_cols * itemsize, 1), sub)

    # Hard VMEM ceiling: double-buffered (in + out) tiles <= 16 MiB total.
    budget_bytes = 16 * 1024 * 1024
    bytes_per_row = 2 * (in_cols + out_cols) * itemsize
    r = min(r, _round_down(budget_bytes // max(bytes_per_row, 1), sub))

    # Prefer at least 2 grid steps so both v7x TensorCores get work.
    half = _round_up(_round_up(rows, 2) // 2, sub)
    r = min(r, half)
    return min(r, rows)


def chomp2d(x: jax.Array, chomp_size: int) -> jax.Array:
    """Pallas implementation of Chomp2d.forward: x[..., :-chomp_size]."""
    B, N, F, T = x.shape
    assert chomp_size > 0, "chomp_size must be positive (as used in a TCN)"
    T_out = T - chomp_size
    assert T_out > 0, "chomp_size must be smaller than the time dimension"

    rows = B * N * F
    x2 = x.reshape(rows, T)                 # free: contiguous reshape
    itemsize = jnp.dtype(x.dtype).itemsize

    # Narrow the input block to T_out columns only when the lane rule allows
    # (last block dim must be a multiple of 128 or equal the full array dim).
    in_cols = T_out if (T_out % 128 == 0) else T

    r_blk = _pick_row_block(rows, in_cols, T_out, itemsize)
    grid = (pl.cdiv(rows, r_blk),)

    cost = pl.CostEstimate(
        flops=0,
        transcendentals=0,
        bytes_accessed=rows * (in_cols + T_out) * itemsize,
    )

    y2 = pl.pallas_call(
        _chomp_copy_kernel,
        out_shape=jax.ShapeDtypeStruct((rows, T_out), x.dtype),
        grid_spec=pltpu.PrefetchScalarGridSpec(
            num_scalar_prefetch=0,
            grid=grid,
            in_specs=[pl.BlockSpec((r_blk, in_cols), lambda r: (r, 0))],
            out_specs=pl.BlockSpec((r_blk, T_out), lambda r: (r, 0)),
        ),
        compiler_params=pltpu.CompilerParams(
            dimension_semantics=("parallel",),
        ),
        cost_estimate=cost,
    )(x2)

    return y2.reshape(B, N, F, T_out)


if __name__ == "__main__":
    key = jax.random.PRNGKey(0)
    # [batch_size, num_nodes, num_features, num_time_steps]
    B, N, F, T = 2, 4, 16, 16
    chomp_size = 4

    x = jax.random.normal(key, (B, N, F, T), dtype=jnp.float32)

    y = chomp2d(x, chomp_size)
    y = jax.block_until_ready(y)

    # Reference: plain-JAX slice, same semantics as the PyTorch module.
    y_ref = x[:, :, :, :-chomp_size]
    assert y.shape == (B, N, F, T - chomp_size)
    assert jnp.array_equal(y, y_ref)

    print("KERNEL_OK")
</pallas_src>

<mosaic_0001>
module attributes {stable_mosaic.version = 11 : i64} {
  func.func @_chomp_copy_kernel(%arg0: i32, %arg1: memref<64x16xf32, #tpu.memory_space<vmem>>, %arg2: memref<64x12xf32, #tpu.memory_space<vmem>>) attributes {dimension_semantics = [#tpu.dimension_semantics<parallel>], iteration_bounds = array<i64: 2>, scalar_prefetch = 0 : i64, scratch_operands = 0 : i64, tpu.core_type = #tpu.core_type<tc>, window_params = [{transform_indices = @transform_0, window_bounds = array<i64: 64, 16>}, {transform_indices = @transform_1, window_bounds = array<i64: 64, 12>}]} {
    %c0 = arith.constant 0 : index
    %c0_0 = arith.constant 0 : index
    %0 = vector.load %arg1[%c0, %c0_0] : memref<64x16xf32, #tpu.memory_space<vmem>>, vector<64x12xf32>
    %c0_1 = arith.constant 0 : index
    %c0_2 = arith.constant 0 : index
    %1 = vector.load %arg2[%c0_1, %c0_2] : memref<64x12xf32, #tpu.memory_space<vmem>>, vector<64x12xf32>
    tpu.vector_store %arg2[%c0_1, %c0_2], %0 {strides = array<i32>} : memref<64x12xf32, #tpu.memory_space<vmem>>, vector<64x12xf32>,
    return
  }
  func.func @transform_0(%arg0: i32) -> (i32, i32) {
    %c0_i32 = arith.constant 0 : i32
    %c0_i32_0 = arith.constant 0 : i32
    return %arg0, %c0_i32 : i32, i32
  }
  func.func @transform_1(%arg0: i32) -> (i32, i32) {
    %c0_i32 = arith.constant 0 : i32
    %c0_i32_0 = arith.constant 0 : i32
    return %arg0, %c0_i32 : i32, i32
  }
}

</mosaic_0001>

<llo_original>
// kernel: tpu_custom_call.1
$region0: #{tpu_custom_call.1}
  #allocation0 [shape = 'u32[]', space=smem, size = 0x4, offset = 0x4, fixed_abs, tag = 'smem constant byte address 0x4 - core index']
  #allocation1 [shape = 'u32[72,128]{1,0:T(1,128)}', space=vmem, size = 0x9000, scoped, tag = 'internal scratch']
  %s0 = inlined_call_operand.vmem [shape: f32[128,16], index: 0, kind: input, shape index: {}]
  %s1 = inlined_call_operand.vmem [shape: f32[128,12], index: 1, kind: output, shape index: {}]
  %s2 = sld [smem:[#allocation0]]
  $region37: #{tpu_custom_call.1} parent=0
    _
  %s4 = ssub.s32 1, %s2
  %s5 = scalar_select 0, %s4, %s2
  loop: start=0, step=1, limit=4
  $region2: #{tpu_custom_call.1} parent=0 // loop_pre_header
    _
  $region3: #{tpu_custom_call.1} parent=0 // loop_header
    %s7 = sphi 0, %s11
    %p8 = scmp.ge.s32.totalorder %s7, 4
    %s17 = sphi 0, %s19
    %s20 = sphi 0, %s17
    %s21 = sphi 0, %s20
    %s37 = sphi 0, %s21
    %s43 = sphi 0, %s45
    %s46 = sphi 0, %s43
    %s47 = sphi 0, %s46
    %s63 = sphi 0, %s47
  $region4: #{tpu_custom_call.1} parent=0 // loop_header_branch
    %10 = sbr.rel (%p8) target = $region8
  $region5: #{tpu_custom_call.1} parent=0 // loop_body
    %s12 = ssub.s32 %s7, 1
    %s13 = ssub.s32 %s7, 2
    %s14 = sadd.s32 %s7, 1
    %s15 = ssub.s32 %s7, %s14
    %p16 = scmp.eq.s32.totalorder %s15, 0
    %s18 = sadd.s32 %s17, 1
    %s19 = scalar_select %p16, %s17, %s18
    %p22 = pneg %p16
    %p23 = scmp.eq.s32.totalorder %s7, 1
    %p24 = por %p22, %p23
    %p25 = scmp.ne.s32.totalorder %s17, %s20
    %p26 = scmp.eq.s32.totalorder %s7, 0
    %p27 = por %p25, %p26
    %p28 = scmp.ne.s32.totalorder %s17, %s20
    %p29 = scmp.eq.s32.totalorder %s12, 1
    %p30 = por %p28, %p29
    %p31 = scmp.ne.s32.totalorder %s20, %s21
    %p32 = scmp.eq.s32.totalorder %s12, 0
    %p33 = por %p31, %p32
    %p34 = scmp.ne.s32.totalorder %s20, %s21
    %p35 = scmp.eq.s32.totalorder %s13, 1
    %p36 = por %p34, %p35
    %p38 = scmp.ne.s32.totalorder %s21, %s37
    %p39 = scmp.eq.s32.totalorder %s13, 0
    %p40 = por %p38, %p39
    %s41 = ssub.s32 %s7, %s14
    %p42 = scmp.eq.s32.totalorder %s41, 0
    %s44 = sadd.s32 %s43, 1
    %s45 = scalar_select %p42, %s43, %s44
    %p48 = pneg %p42
    %p49 = scmp.eq.s32.totalorder %s7, 1
    %p50 = por %p48, %p49
    %p51 = scmp.ne.s32.totalorder %s43, %s46
    %p52 = scmp.eq.s32.totalorder %s7, 0
    %p53 = por %p51, %p52
    %p54 = scmp.ne.s32.totalorder %s43, %s46
    %p55 = scmp.eq.s32.totalorder %s12, 1
    %p56 = por %p54, %p55
    %p57 = scmp.ne.s32.totalorder %s46, %s47
    %p58 = scmp.eq.s32.totalorder %s12, 0
    %p59 = por %p57, %p58
    %p60 = scmp.ne.s32.totalorder %s46, %s47
    %p61 = scmp.eq.s32.totalorder %s13, 1
    %p62 = por %p60, %p61
    %p64 = scmp.ne.s32.totalorder %s47, %s63
    %p65 = scmp.eq.s32.totalorder %s13, 0
    %p66 = por %p64, %p65
    %p67 = scmp.le.s32.totalorder 1, %s7
    %p68 = scmp.lt.s32.totalorder %s7, 3
    %p69 = pnand %p67, %p68
    %p70 = pneg %p69
    // Predicated region
    $region9: #{tpu_custom_call.1} parent=5 // pred_check
      _
    $region10: #{tpu_custom_call.1} parent=5 // pred_check_branch
      %72 = sbr.rel (%p69) target = $region12
    $region11: #{tpu_custom_call.1} parent=5 // pred_region
      %s73 = ssub.s32 %s7, 1
    $region12: #{tpu_custom_call.1} parent=5 // pred_fallthru
      _
    %p74 = scmp.lt.s32.totalorder %s7, 2
    // Predicated region
    $region13: #{tpu_custom_call.1} parent=5 // pred_check
      %p75 = pneg %p74
    $region14: #{tpu_custom_call.1} parent=5 // pred_check_branch
      %77 = sbr.rel (%p75) target = $region16
    $region15: #{tpu_custom_call.1} parent=5 // pred_region
      // Predicated region
      $region17: #{tpu_custom_call.1} parent=15 // pred_check
        %p78 = pneg %p27
      $region18: #{tpu_custom_call.1} parent=15 // pred_check_branch
        %80 = sbr.rel (%p78) target = $region20
      $region19: #{tpu_custom_call.1} parent=15 // pred_region
        %s81 = smul.u32 8, %s7
        %p82 = scmp.lt.s32.totalorder %s81, 15
        %s83 = scalar_select %p82, %s81, 15
        %s84 = smul.addr %s83, 8
        %s85 = scalar_lea.vmem %s0, %s84
        %s86 = smul.u32 8, %s7
      $region20: #{tpu_custom_call.1} parent=15 // pred_fallthru
        _
    $region16: #{tpu_custom_call.1} parent=5 // pred_fallthru
      _
    %p87 = scmp.le.s32.totalorder 1, %s7
    %p88 = scmp.lt.s32.totalorder %s7, 3
    %p89 = pnand %p87, %p88
    %p90 = pneg %p89
    // Predicated region
    $region21: #{tpu_custom_call.1} parent=5 // pred_check
      _
    $region22: #{tpu_custom_call.1} parent=5 // pred_check_branch
      %92 = sbr.rel (%p89) target = $region24
    $region23: #{tpu_custom_call.1} parent=5 // pred_region
      %s93 = ssub.s32 %s7, 1
      %s94 = smul.u32 8, %s12
      %p95 = scmp.lt.s32.totalorder %s94, 15
      %s96 = scalar_select %p95, %s94, 15
      %s97 = smul.addr %s96, 8
      %s98 = scalar_lea.vmem %s0, %s97
      %p99 = pneg %p33
      %p100 = pneg %p30
      %p101 = pneg %p59
      %p102 = pneg %p56
      %s103 = smul.u32 8, %s12
      %p104 = scmp.lt.s32.totalorder %s103, 15
      %s105 = scalar_select %p104, %s103, 15
      %s106 = smul.addr %s105, 8
      %s107 = scalar_lea.vmem %s1, %s106
      %s108 = smul.u32 8, %s12
      %p109 = scmp.lt.s32.totalorder %s108, 15
      %s110 = scalar_select %p109, %s108, 15
      %s111 = smul.addr %s110, 8
      %s112 = scalar_lea.vmem %s0, %s111
      %s113 = smul.u32 8, %s12
      %s114 = smul.u32 8, %s12
      %p115 = scmp.lt.s32.totalorder %s114, 15
      %s116 = scalar_select %p115, %s114, 15
      %s117 = smul.addr %s116, 8
      %s118 = scalar_lea.vmem %s1, %s117
      %s119 = smul.u32 8, %s12
      %v120 = vld [vmem:[%s112] sm:$0xff]
      %v121 = vld [vmem:[%s112 + $0x8] sm:$0xff]
      %v122 = vld [vmem:[%s112 + $0x10] sm:$0xff]
      %v123 = vld [vmem:[%s112 + $0x18] sm:$0xff]
      %v124 = vld [vmem:[%s112 + $0x20] sm:$0xff]
      %v125 = vld [vmem:[%s112 + $0x28] sm:$0xff]
      %v126 = vld [vmem:[%s112 + $0x30] sm:$0xff]
      %v127 = vld [vmem:[%s112 + $0x38] sm:$0xff]
      %vm128 = vcmask 97280
      %129 = vst.msk [vmem:[%s118] sm:$0xff] %vm128, %v120
      %130 = vst.msk [vmem:[%s118 + $0x8] sm:$0xff] %vm128, %v121
      %131 = vst.msk [vmem:[%s118 + $0x10] sm:$0xff] %vm128, %v122
      %132 = vst.msk [vmem:[%s118 + $0x18] sm:$0xff] %vm128, %v123
      %133 = vst.msk [vmem:[%s118 + $0x20] sm:$0xff] %vm128, %v124
      %134 = vst.msk [vmem:[%s118 + $0x28] sm:$0xff] %vm128, %v125
      %135 = vst.msk [vmem:[%s118 + $0x30] sm:$0xff] %vm128, %v126
      %136 = vst.msk [vmem:[%s118 + $0x38] sm:$0xff] %vm128, %v127
      %s137 = smul.u32 8, %s12
      %p138 = scmp.lt.s32.totalorder %s137, 15
      %s139 = scalar_select %p138, %s137, 15
      %s140 = smul.addr %s139, 8
      %s141 = scalar_lea.vmem %s1, %s140
      // Predicated region
      $region25: #{tpu_custom_call.1} parent=23 // pred_check
        %p142 = pneg %p56
      $region26: #{tpu_custom_call.1} parent=23 // pred_check_branch
        %144 = sbr.rel (%p142) target = $region28
      $region27: #{tpu_custom_call.1} parent=23 // pred_region
        %s145 = smul.u32 8, %s12
      $region28: #{tpu_custom_call.1} parent=23 // pred_fallthru
        _
    $region24: #{tpu_custom_call.1} parent=5 // pred_fallthru
      _
    %p146 = scmp.le.s32.totalorder 2, %s7
    // Predicated region
    $region29: #{tpu_custom_call.1} parent=5 // pred_check
      %p147 = pneg %p146
    $region30: #{tpu_custom_call.1} parent=5 // pred_check_branch
      %149 = sbr.rel (%p147) target = $region32
    $region31: #{tpu_custom_call.1} parent=5 // pred_region
      %s150 = ssub.s32 %s7, 2
      // Predicated region
      $region33: #{tpu_custom_call.1} parent=31 // pred_check
        %p151 = pneg %p62
      $region34: #{tpu_custom_call.1} parent=31 // pred_check_branch
        %153 = sbr.rel (%p151) target = $region36
      $region35: #{tpu_custom_call.1} parent=31 // pred_region
        %s154 = smul.u32 8, %s13
        %p155 = scmp.lt.s32.totalorder %s154, 15
        %s156 = scalar_select %p155, %s154, 15
        %s157 = smul.addr %s156, 8
        %s158 = scalar_lea.vmem %s1, %s157
      $region36: #{tpu_custom_call.1} parent=31 // pred_fallthru
        _
    $region32: #{tpu_custom_call.1} parent=5 // pred_fallthru
      _
  $region6: #{tpu_custom_call.1} parent=0 // loop_footer
    %s11 = sadd.s32 1, %s7
  $region7: #{tpu_custom_call.1} parent=0 // loop_footer_branch
    %6 = sbr.rel target = $region3
  $region8: #{tpu_custom_call.1} parent=0 // loop_exit
    _

</llo_original>
